<compile_context>
chip_gen: v7x
topology: tpu7x:2x2x1
jax: 0.10.0
libtpu: 0.0.40
codegen_flags: <defaults>
</compile_context>

<pallas_src>
import jax
import jax.numpy as jnp
from jax import lax
from jax.experimental import pallas as pl
from jax.experimental.pallas import tpu as pltpu


def _round_up(x: int, m: int) -> int:
    return ((x + m - 1) // m) * m


def _chip_config():
    """Per-generation roofline defaults: (tm, tff, vmem_limit_bytes, num_tensorcores)."""
    kind = ""
    try:
        kind = jax.devices()[0].device_kind.lower()
    except Exception:
        pass
    vmem_cap = None
    try:
        vmem_cap = pltpu.get_tpu_info().vmem_capacity_bytes
    except Exception:
        pass
    if "v5" in kind:            # v5e/v5p: tm=256 already sits at the BW/compute knee
        tm, tff, ntc, cap = 256, 512, 1, 128 << 20
    elif "v6" in kind:          # v6e: ridge ~650 rows -> bigger row tile, 128 MiB VMEM
        tm, tff, ntc, cap = 512, 512, 1, 128 << 20
    elif "7" in kind:           # v7x: 2 TCs/chip, 64 MiB VMEM, ridge ~320 rows
        tm, tff, ntc, cap = 384, 512, 2, 64 << 20
    else:
        tm, tff, ntc, cap = 256, 512, 1, 64 << 20
    if vmem_cap:
        cap = vmem_cap
    return tm, tff, int(cap * 0.85), ntc   # ~15% headroom for compiler scratch


def prepare_ffn_params(w1, b1, w2, b2, compute_dtype=jnp.bfloat16):
    """One-time (model-init) conversion so the per-call wrapper never re-casts weights."""
    return (w1.astype(compute_dtype), b1.astype(jnp.float32),
            w2.astype(compute_dtype), b2.astype(jnp.float32))


def ffn_kernel(x_ref, w1_ref, b1_ref, w2_ref, b2_ref, o_ref, acc_ref):
    # x_ref:  (tm, d_model)        compute dtype
    # w1_ref: (tff, d_model)       PyTorch (out, in) chunk of W1
    # b1_ref: (1, tff)             f32
    # w2_ref: (d_model, tff)       PyTorch (out, in) chunk of W2
    # b2_ref: (1, d_model)         f32
    # o_ref:  (tm, d_model)
    # acc_ref: (tm, d_model) f32 VMEM scratch, resident across the d_ff axis
    k = pl.program_id(1)
    nk = pl.num_programs(1)

    @pl.when(k == 0)
    def _():
        acc_ref[...] = jnp.zeros_like(acc_ref)

    x = x_ref[...]
    # h_chunk = relu(x @ W1_chunk^T + b1_chunk); contract on d_model (last axes).
    h = lax.dot_general(
        x, w1_ref[...],
        dimension_numbers=(((1,), (1,)), ((), ())),
        preferred_element_type=jnp.float32,
    )
    h = jnp.maximum(h + b1_ref[...], 0.0).astype(x.dtype)

    # partial y = h_chunk @ W2_chunk^T; contract on the d_ff chunk (last axes).
    partial = lax.dot_general(
        h, w2_ref[...],
        dimension_numbers=(((1,), (1,)), ((), ())),
        preferred_element_type=jnp.float32,
    )

    is_last = k == nk - 1

    @pl.when(jnp.logical_not(is_last))
    def _():
        acc_ref[...] += partial

    @pl.when(is_last)
    def _():
        # Fused final step: no extra (tm, d_model) f32 acc store + readback.
        o_ref[...] = (acc_ref[...] + partial + b2_ref[...]).astype(o_ref.dtype)


def feed_forward_layer(x, w1, b1, w2, b2, *, tm=None, tff=None,
                       compute_dtype=None, out_dtype=None):
    """x: (batch, seq, d_model); w1: (d_ff, d_model); b1: (d_ff,);
       w2: (d_model, d_ff); b2: (d_model,). Returns (batch, seq, d_model)."""
    batch, seq, d_model = x.shape
    d_ff = w1.shape[0]
    assert w1.shape == (d_ff, d_model) and w2.shape == (d_model, d_ff)
    out_dtype = out_dtype or x.dtype

    tm_def, tff_def, vmem_limit, num_tc = _chip_config()
    tm = tm or tm_def
    tff = tff or tff_def

    # Weights should arrive already in the compute dtype (prepare_ffn_params at
    # model init); default the compute dtype to the weight dtype so no per-call
    # HBM pass is spent re-casting W1/W2.
    compute_dtype = compute_dtype or w1.dtype

    M = batch * seq

    # --- row (M) tiling: clamp for small inputs, pad so the grid divides evenly ---
    tm_eff = min(tm, _round_up(M, 8))
    M_pad = _round_up(M, tm_eff)
    # Keep both TensorCores busy on multi-TC chips (v7x): need >= 2 row tiles.
    if num_tc >= 2 and M_pad // tm_eff < 2 and M > 8:
        tm_eff = _round_up(-(-M // 2), 8)
        M_pad = _round_up(M, tm_eff)

    # --- d_ff (reduction) tiling ---
    if d_ff <= tff:
        tff_eff, d_ff_pad = d_ff, d_ff
    else:
        assert tff % 128 == 0, "d_ff tile must be a multiple of 128"
        tff_eff = tff
        d_ff_pad = _round_up(d_ff, tff_eff)

    x2d = x.reshape(M, d_model).astype(compute_dtype)
    if M_pad != M:
        x2d = jnp.pad(x2d, ((0, M_pad - M), (0, 0)))

    # No-op when params were prepared at init (the intended production path).
    w1c = w1 if w1.dtype == compute_dtype else w1.astype(compute_dtype)
    w2c = w2 if w2.dtype == compute_dtype else w2.astype(compute_dtype)
    b1f = b1 if b1.dtype == jnp.float32 else b1.astype(jnp.float32)
    b2f = b2 if b2.dtype == jnp.float32 else b2.astype(jnp.float32)
    if d_ff_pad != d_ff:
        w1c = jnp.pad(w1c, ((0, d_ff_pad - d_ff), (0, 0)))
        w2c = jnp.pad(w2c, ((0, 0), (0, d_ff_pad - d_ff)))
        b1f = jnp.pad(b1f, (0, d_ff_pad - d_ff))
    b1r = b1f.reshape(1, d_ff_pad)
    b2r = b2f.reshape(1, d_model)

    n_m_tiles = M_pad // tm_eff
    grid = (n_m_tiles, d_ff_pad // tff_eff)

    w_item = jnp.dtype(compute_dtype).itemsize
    cost = pl.CostEstimate(
        flops=4 * M * d_model * d_ff,                    # two matmuls, 2 flops/MAC
        transcendentals=0,
        bytes_accessed=(
            x2d.size * w_item
            + (w1c.size + w2c.size) * w_item * n_m_tiles  # weights re-streamed per M tile
            + (b1r.size + b2r.size) * 4 * n_m_tiles
            + M_pad * d_model * jnp.dtype(out_dtype).itemsize
        ),
    )

    out2d = pl.pallas_call(
        ffn_kernel,
        out_shape=jax.ShapeDtypeStruct((M_pad, d_model), out_dtype),
        grid_spec=pltpu.PrefetchScalarGridSpec(
            num_scalar_prefetch=0,
            grid=grid,
            in_specs=[
                pl.BlockSpec((tm_eff, d_model), lambda i, k: (i, 0)),   # x row tile
                pl.BlockSpec((tff_eff, d_model), lambda i, k: (k, 0)),  # W1 chunk (out,in)
                pl.BlockSpec((1, tff_eff), lambda i, k: (0, k)),        # b1 chunk
                pl.BlockSpec((d_model, tff_eff), lambda i, k: (0, k)),  # W2 chunk (out,in)
                pl.BlockSpec((1, d_model), lambda i, k: (0, 0)),        # b2
            ],
            out_specs=pl.BlockSpec((tm_eff, d_model), lambda i, k: (i, 0)),
            scratch_shapes=[pltpu.VMEM((tm_eff, d_model), jnp.float32)],
        ),
        compiler_params=pltpu.CompilerParams(
            dimension_semantics=("parallel", "arbitrary"),
            vmem_limit_bytes=vmem_limit,
        ),
        cost_estimate=cost,
    )(x2d, w1c, b1r, w2c, b2r)

    return out2d[:M].reshape(batch, seq, d_model)


if __name__ == "__main__":
    batch, seq, d_model, d_ff = 2, 8, 32, 64

    key = jax.random.PRNGKey(0)
    kx, kw1, kb1, kw2, kb2 = jax.random.split(key, 5)

    x = jax.random.normal(kx, (batch, seq, d_model), dtype=jnp.float32)
    # nn.Linear layout: weight (out_features, in_features), bias (out_features,)
    w1 = jax.random.normal(kw1, (d_ff, d_model), dtype=jnp.float32) * 0.05
    b1 = jax.random.normal(kb1, (d_ff,), dtype=jnp.float32) * 0.05
    w2 = jax.random.normal(kw2, (d_model, d_ff), dtype=jnp.float32) * 0.05
    b2 = jax.random.normal(kb2, (d_model,), dtype=jnp.float32) * 0.05

    # Pure-JAX f32 reference.
    ref = jnp.maximum(x @ w1.T + b1, 0.0) @ w2.T + b2

    # 1) f32 compute path: exact-math sanity check of the kernel structure.
    out_f32 = feed_forward_layer(x, w1, b1, w2, b2, compute_dtype=jnp.float32)
    jax.block_until_ready(out_f32)
    assert out_f32.shape == (batch, seq, d_model)
    assert jnp.allclose(out_f32, ref, atol=1e-5, rtol=1e-5)

    # 2) Production-style fast path: weights prepared ONCE in bf16 (no per-call
    #    weight casts in the wrapper), f32 MXU accumulation inside the kernel.
    w1b, b1b, w2b, b2b = prepare_ffn_params(w1, b1, w2, b2, jnp.bfloat16)
    out_bf16 = feed_forward_layer(x, w1b, b1b, w2b, b2b)
    jax.block_until_ready(out_bf16)
    assert out_bf16.shape == (batch, seq, d_model)
    assert jnp.allclose(out_bf16, ref, atol=2e-2, rtol=2e-2)

    print("KERNEL_OK")
</pallas_src>

<mosaic_0001>
module attributes {stable_mosaic.version = 11 : i64} {
  func.func @ffn_kernel(%arg0: i32, %arg1: i32, %arg2: memref<16x32xf32, #tpu.memory_space<vmem>>, %arg3: memref<64x32xf32, #tpu.memory_space<vmem>>, %arg4: memref<1x64xf32, #tpu.memory_space<vmem>>, %arg5: memref<32x64xf32, #tpu.memory_space<vmem>>, %arg6: memref<1x32xf32, #tpu.memory_space<vmem>>, %arg7: memref<16x32xf32, #tpu.memory_space<vmem>>, %arg8: memref<16x32xf32, #tpu.memory_space<vmem>>) attributes {dimension_semantics = [#tpu.dimension_semantics<parallel>, #tpu.dimension_semantics<arbitrary>], iteration_bounds = array<i64: 1, 1>, scalar_prefetch = 0 : i64, scratch_operands = 1 : i64, tpu.core_type = #tpu.core_type<tc>, window_params = [{transform_indices = @transform_0, window_bounds = array<i64: 16, 32>}, {transform_indices = @transform_1, window_bounds = array<i64: 64, 32>}, {transform_indices = @transform_2, window_bounds = array<i64: 1, 64>}, {transform_indices = @transform_3, window_bounds = array<i64: 32, 64>}, {pipeline_mode = #tpu.pipeline_mode<synchronous>, transform_indices = @transform_4, window_bounds = array<i64: 1, 32>}, {transform_indices = @transform_5, window_bounds = array<i64: 16, 32>}]} {
    %c0_i32 = arith.constant 0 : i32
    %0 = arith.cmpi eq, %arg1, %c0_i32 : i32
    %1 = arith.extui %0 : i1 to i32
    %c0_i32_0 = arith.constant 0 : i32
    %2 = arith.cmpi ne, %1, %c0_i32_0 : i32
    scf.if %2 {
      %cst_13 = arith.constant 0.000000e+00 : f32
      %19 = vector.broadcast %cst_13 : f32 to vector<16x32xf32>
      %c0_14 = arith.constant 0 : index
      %c0_15 = arith.constant 0 : index
      %20 = vector.load %arg8[%c0_14, %c0_15] : memref<16x32xf32, #tpu.memory_space<vmem>>, vector<16x32xf32>
      tpu.vector_store %arg8[%c0_14, %c0_15], %19 {strides = array<i32>} : memref<16x32xf32, #tpu.memory_space<vmem>>, vector<16x32xf32>,
    } else {
    }
    %c0 = arith.constant 0 : index
    %c0_1 = arith.constant 0 : index
    %3 = vector.load %arg2[%c0, %c0_1] : memref<16x32xf32, #tpu.memory_space<vmem>>, vector<16x32xf32>
    %c0_2 = arith.constant 0 : index
    %c0_3 = arith.constant 0 : index
    %4 = vector.load %arg3[%c0_2, %c0_3] : memref<64x32xf32, #tpu.memory_space<vmem>>, vector<64x32xf32>
    %cst = arith.constant dense<0.000000e+00> : vector<16x64xf32>
    %5 = tpu.matmul %3, %4, %cst {dimension_numbers = #tpu.dot_dimension_numbers<[1], [1], [0], [0], [0, 0, 1, 0], [], []>} : vector<16x32xf32>, vector<64x32xf32>, vector<16x64xf32> -> vector<16x64xf32>
    %c0_4 = arith.constant 0 : index
    %c0_5 = arith.constant 0 : index
    %6 = vector.load %arg4[%c0_4, %c0_5] : memref<1x64xf32, #tpu.memory_space<vmem>>, vector<1x64xf32>
    %7 = vector.broadcast %6 : vector<1x64xf32> to vector<16x64xf32>
    %8 = arith.addf %5, %7 : vector<16x64xf32>
    %cst_6 = arith.constant 0.000000e+00 : f32
    %9 = vector.broadcast %cst_6 : f32 to vector<16x64xf32>
    %10 = arith.maximumf %8, %9 : vector<16x64xf32>
    %c0_7 = arith.constant 0 : index
    %c0_8 = arith.constant 0 : index
    %11 = vector.load %arg5[%c0_7, %c0_8] : memref<32x64xf32, #tpu.memory_space<vmem>>, vector<32x64xf32>
    %cst_9 = arith.constant dense<0.000000e+00> : vector<16x32xf32>
    %12 = tpu.matmul %10, %11, %cst_9 {dimension_numbers = #tpu.dot_dimension_numbers<[1], [1], [0], [0], [0, 0, 1, 0], [], []>} : vector<16x64xf32>, vector<32x64xf32>, vector<16x32xf32> -> vector<16x32xf32>
    %c0_i32_10 = arith.constant 0 : i32
    %13 = arith.cmpi eq, %arg1, %c0_i32_10 : i32
    %true = arith.constant true
    %14 = arith.xori %13, %true : i1
    %15 = arith.extui %14 : i1 to i32
    %c0_i32_11 = arith.constant 0 : i32
    %16 = arith.cmpi ne, %15, %c0_i32_11 : i32
    scf.if %16 {
      %c0_13 = arith.constant 0 : index
      %c0_14 = arith.constant 0 : index
      %19 = vector.load %arg8[%c0_13, %c0_14] : memref<16x32xf32, #tpu.memory_space<vmem>>, vector<16x32xf32>
      %20 = arith.addf %19, %12 : vector<16x32xf32>
      %c0_15 = arith.constant 0 : index
      %c0_16 = arith.constant 0 : index
      %21 = vector.load %arg8[%c0_15, %c0_16] : memref<16x32xf32, #tpu.memory_space<vmem>>, vector<16x32xf32>
      tpu.vector_store %arg8[%c0_15, %c0_16], %20 {strides = array<i32>} : memref<16x32xf32, #tpu.memory_space<vmem>>, vector<16x32xf32>,
    } else {
    }
    %17 = arith.extui %13 : i1 to i32
    %c0_i32_12 = arith.constant 0 : i32
    %18 = arith.cmpi ne, %17, %c0_i32_12 : i32
    scf.if %18 {
      %c0_13 = arith.constant 0 : index
      %c0_14 = arith.constant 0 : index
      %19 = vector.load %arg8[%c0_13, %c0_14] : memref<16x32xf32, #tpu.memory_space<vmem>>, vector<16x32xf32>
      %20 = arith.addf %19, %12 : vector<16x32xf32>
      %c0_15 = arith.constant 0 : index
      %c0_16 = arith.constant 0 : index
      %21 = vector.load %arg6[%c0_15, %c0_16] : memref<1x32xf32, #tpu.memory_space<vmem>>, vector<1x32xf32>
      %22 = vector.broadcast %21 : vector<1x32xf32> to vector<16x32xf32>
      %23 = arith.addf %20, %22 : vector<16x32xf32>
      %c0_17 = arith.constant 0 : index
      %c0_18 = arith.constant 0 : index
      %24 = vector.load %arg7[%c0_17, %c0_18] : memref<16x32xf32, #tpu.memory_space<vmem>>, vector<16x32xf32>
      tpu.vector_store %arg7[%c0_17, %c0_18], %23 {strides = array<i32>} : memref<16x32xf32, #tpu.memory_space<vmem>>, vector<16x32xf32>,
    } else {
    }
    return
  }
  func.func @transform_0(%arg0: i32, %arg1: i32) -> (i32, i32) {
    %c0_i32 = arith.constant 0 : i32
    %c0_i32_0 = arith.constant 0 : i32
    return %arg0, %c0_i32 : i32, i32
  }
  func.func @transform_1(%arg0: i32, %arg1: i32) -> (i32, i32) {
    %c0_i32 = arith.constant 0 : i32
    %c0_i32_0 = arith.constant 0 : i32
    return %arg1, %c0_i32 : i32, i32
  }
  func.func @transform_2(%arg0: i32, %arg1: i32) -> (i32, i32) {
    %c0_i32 = arith.constant 0 : i32
    %c0_i32_0 = arith.constant 0 : i32
    return %c0_i32, %arg1 : i32, i32
  }
  func.func @transform_3(%arg0: i32, %arg1: i32) -> (i32, i32) {
    %c0_i32 = arith.constant 0 : i32
    %c0_i32_0 = arith.constant 0 : i32
    return %c0_i32, %arg1 : i32, i32
  }
  func.func @transform_4(%arg0: i32, %arg1: i32) -> (i32, i32) {
    %c0_i32 = arith.constant 0 : i32
    %c0_i32_0 = arith.constant 0 : i32
    %c0_i32_1 = arith.constant 0 : i32
    return %c0_i32, %c0_i32_0 : i32, i32
  }
  func.func @transform_5(%arg0: i32, %arg1: i32) -> (i32, i32) {
    %c0_i32 = arith.constant 0 : i32
    %c0_i32_0 = arith.constant 0 : i32
    return %arg0, %c0_i32 : i32, i32
  }
}

</mosaic_0001>

<llo_original>
// kernel: tpu_custom_call.1
$region0: #{tpu_custom_call.1}
  #allocation0 [shape = 'u32[]', space=smem, size = 0x4, offset = 0x4, fixed_abs, tag = 'smem constant byte address 0x4 - core index']
  #allocation1 [shape = 'u32[144,128]{1,0:T(1,128)}', space=vmem, size = 0x12000, scoped, tag = 'internal scratch']
  #allocation2 [shape = 'f32[16,32]{1,0:T(8,128)}', space=vmem, size = 0x2000, scoped, tag = 'scratch operand']
  %s0 = inlined_call_operand.vmem [shape: f32[16,32], index: 0, kind: input, shape index: {}]
  %s1 = inlined_call_operand.vmem [shape: f32[64,32], index: 1, kind: input, shape index: {}]
  %s2 = inlined_call_operand.vmem [shape: f32[1,64], index: 2, kind: input, shape index: {}]
  %s3 = inlined_call_operand.vmem [shape: f32[32,64], index: 3, kind: input, shape index: {}]
  %s4 = inlined_call_operand.vmem [shape: f32[1,32], index: 4, kind: input, shape index: {}]
  %s5 = inlined_call_operand.hbm [shape: f32[16,32], index: 5, kind: output, shape index: {}]
  %s6 = sld [smem:[#allocation0]]
  $region42: #{tpu_custom_call.1} parent=0
    _
  %s8 = ssub.s32 1, %s6
  %s9 = scalar_select 0, %s8, %s6
  $region1: #{tpu_custom_call.1} parent=0
    #allocation3 [shape = 'u8[8192]{0}', space=vmem, size = 0x2000, scoped, tag = 'output window, operand 0, single buffered']
    #allocation4 [shape = 's32[1]{0}', space=sflag, size = 0x4, scoped, tag = 'scoped memory for tpu_custom_call.1']
    %10 = vsyncpa [#allocation4], 0
    // Predicated region
    $region2: #{tpu_custom_call.1} parent=1 // pred_check
      _
    $region3: #{tpu_custom_call.1} parent=1 // pred_check_branch
      %12 = sbr.rel (0) target = $region5
    $region4: #{tpu_custom_call.1} parent=1 // pred_region
      _
    $region5: #{tpu_custom_call.1} parent=1 // pred_fallthru
      _
    // Predicated region
    $region6: #{tpu_custom_call.1} parent=1 // pred_check
      _
    $region7: #{tpu_custom_call.1} parent=1 // pred_check_branch
      %14 = sbr.rel (0) target = $region9
    $region8: #{tpu_custom_call.1} parent=1 // pred_region
      _
    $region9: #{tpu_custom_call.1} parent=1 // pred_fallthru
      _
    // Predicated region
    $region10: #{tpu_custom_call.1} parent=1 // pred_check
      _
    $region11: #{tpu_custom_call.1} parent=1 // pred_check_branch
      %16 = sbr.rel (0) target = $region13
    $region12: #{tpu_custom_call.1} parent=1 // pred_region
      _
    $region13: #{tpu_custom_call.1} parent=1 // pred_fallthru
      _
    // Predicated region
    $region14: #{tpu_custom_call.1} parent=1 // pred_check
      _
    $region15: #{tpu_custom_call.1} parent=1 // pred_check_branch
      %18 = sbr.rel (0) target = $region17
    $region16: #{tpu_custom_call.1} parent=1 // pred_region
      _
    $region17: #{tpu_custom_call.1} parent=1 // pred_fallthru
      _
    // Predicated region
    $region18: #{tpu_custom_call.1} parent=1 // pred_check
      _
    $region19: #{tpu_custom_call.1} parent=1 // pred_check_branch
      %20 = sbr.rel (0) target = $region21
    $region20: #{tpu_custom_call.1} parent=1 // pred_region
      _
    $region21: #{tpu_custom_call.1} parent=1 // pred_fallthru
      _
    %p21 = scmp.eq.s32.totalorder 0, 0
    // Predicated region
    $region22: #{tpu_custom_call.1} parent=1 // pred_check
      %p22 = pneg %p21
    $region23: #{tpu_custom_call.1} parent=1 // pred_check_branch
      %24 = sbr.rel (%p22) target = $region25
    $region24: #{tpu_custom_call.1} parent=1 // pred_region
      %vm25 = vcmask 261120
      %26 = vst.msk [vmem:[#allocation2] sm:$0xff] %vm25, 0.0
      %27 = vst.msk [vmem:[#allocation2 + $0x8] sm:$0xff] %vm25, 0.0
    $region25: #{tpu_custom_call.1} parent=1 // pred_fallthru
      _
    %v28 = vld [vmem:[%s0] sm:$0xff]
    %v29 = vld [vmem:[%s0 + $0x8] sm:$0xff]
    %v30 = vld [vmem:[%s1] sm:$0xff]
    %v31 = vld [vmem:[%s1 + $0x8] sm:$0xff]
    %v32 = vld [vmem:[%s1 + $0x10] sm:$0xff]
    %v33 = vld [vmem:[%s1 + $0x18] sm:$0xff]
    %v34 = vld [vmem:[%s1 + $0x20] sm:$0xff]
    %v35 = vld [vmem:[%s1 + $0x28] sm:$0xff]
    %v36 = vld [vmem:[%s1 + $0x30] sm:$0xff]
    %v37 = vld [vmem:[%s1 + $0x38] sm:$0xff]
    %v38 = vld [vmem:[%s2] sm:$0x1]
    %v40 = vlaneseq
    %v41 = vshrl.u32 %v40, 7
    %v42 = vsub.s32 0, %v41
    %v43 = vrot.slane %v38, %v42
    %vm45 = vcmask 261120
    %v47 = vsel %vm45, %v28, 0
    %v50 = vsel %vm45, %v29, 0
    %v53 = vsel %vm45, %v30, 0
    %v56 = vsel %vm45, %v31, 0
    %v59 = vsel %vm45, %v32, 0
    %v62 = vsel %vm45, %v33, 0
    %v65 = vsel %vm45, %v34, 0
    %v68 = vsel %vm45, %v35, 0
    %v71 = vsel %vm45, %v36, 0
    %v74 = vsel %vm45, %v37, 0
    %76 = vmatprep.subr.mxu0 0.0
    %77 = vmatpush1.xpose.msra.mxu0 %v53
    %78 = vmatprep.subr.mxu0 0.0
    %79 = vmatpush1.xpose.msra.mxu0 %v56
    %80 = vmatprep.subr.mxu0 0.0
    %81 = vmatpush1.xpose.msra.mxu0 %v59
    %82 = vmatprep.subr.mxu0 0.0
    %83 = vmatpush1.xpose.msra.mxu0 %v62
    %84 = vmatprep.subr.mxu0 0.0
    %85 = vmatpush1.xpose.msra.mxu0 %v65
    %86 = vmatprep.subr.mxu0 0.0
    %87 = vmatpush1.xpose.msra.mxu0 %v68
    %88 = vmatprep.subr.mxu0 0.0
    %89 = vmatpush1.xpose.msra.mxu0 %v71
    %90 = vmatprep.subr.mxu0 0.0
    %91 = vmatpush1.xpose.msra.mxu0 %v74
    %92 = vmatprep.subr.mxu0 0.0
    %93 = vmatpush1.xpose.msra.mxu0 0.0
    %94 = vmatprep.subr.mxu0 0.0
    %95 = vmatpush1.xpose.msra.mxu0 0.0
    %96 = vmatprep.subr.mxu0 0.0
    %97 = vmatpush1.xpose.msra.mxu0 0.0
    %98 = vmatprep.subr.mxu0 0.0
    %99 = vmatpush1.xpose.msra.mxu0 0.0
    %100 = vmatprep.subr.mxu0 0.0
    %101 = vmatpush1.xpose.msra.mxu0 0.0
    %102 = vmatprep.subr.mxu0 0.0
    %103 = vmatpush1.xpose.msra.mxu0 0.0
    %104 = vmatprep.subr.mxu0 0.0
    %105 = vmatpush1.xpose.msra.mxu0 0.0
    %106 = vmatprep.subr.mxu0 0.0
    %107 = vmatpush1.xpose.msra.mxu0 0.0
    %108 = vmatprep.subr.mxu0 0.0
    %109 = vmatpush1.xpose.msra.mxu0 0.0
    %110 = vmatprep.subr.mxu0 0.0
    %111 = vmatpush1.xpose.msra.mxu0 0.0
    %112 = vmatprep.subr.mxu0 0.0
    %113 = vmatpush1.xpose.msra.mxu0 0.0
    %114 = vmatprep.subr.mxu0 0.0
    %115 = vmatpush1.xpose.msra.mxu0 0.0
    %116 = vmatprep.subr.mxu0 0.0
    %117 = vmatpush1.xpose.msra.mxu0 0.0
    %118 = vmatprep.subr.mxu0 0.0
    %119 = vmatpush1.xpose.msra.mxu0 0.0
    %120 = vmatprep.subr.mxu0 0.0
    %121 = vmatpush1.xpose.msra.mxu0 0.0
    %122 = vmatprep.subr.mxu0 0.0
    %123 = vmatpush1.xpose.msra.mxu0 0.0
    %124 = vmatprep.subr.mxu0 0.0
    %125 = vmatpush1.xpose.msra.mxu0 0.0
    %126 = vmatprep.subr.mxu0 0.0
    %127 = vmatpush1.xpose.msra.mxu0 0.0
    %128 = vmatprep.subr.mxu0 0.0
    %129 = vmatpush1.xpose.msra.mxu0 0.0
    %130 = vmatprep.subr.mxu0 0.0
    %131 = vmatpush1.xpose.msra.mxu0 0.0
    %132 = vmatprep.subr.mxu0 0.0
    %133 = vmatpush1.xpose.msra.mxu0 0.0
    %134 = vmatprep.subr.mxu0 0.0
    %135 = vmatpush1.xpose.msra.mxu0 0.0
    %136 = vmatprep.subr.mxu0 0.0
    %137 = vmatpush1.xpose.msra.mxu0 0.0
    %138 = vmatprep.subr.mxu0 0.0
    %139 = vmatpush1.xpose.msra.mxu0 0.0
    %140 = vmatprep.mubr.f32.mxu0 0.0
    %141 = vmatmul.mubr.f32.gmra.mrb[0].mxu0 %v47
    %v142 = vpop.f32.mrb[0].mxu0
    %v143 = vadd.f32 %v43, %v142
    %v144 = vpop.f32.mrb[0].mxu0
    %145 = vmatprep.mubr.f32.mxu0 0.0
    %146 = vmatmul.mubr.f32.gmra.mrb[0].mxu0 %v50
    %v147 = vpop.f32.mrb[0].mxu0
    %v148 = vadd.f32 %v43, %v147
    %v149 = vpop.f32.mrb[0].mxu0
    %150 = vdwg.mxu0
    %v151 = vmax.f32 %v143, 0.0
    %v152 = vmax.f32 %v148, 0.0
    %v153 = vld [vmem:[%s3] sm:$0xff]
    %v154 = vld [vmem:[%s3 + $0x8] sm:$0xff]
    %v155 = vld [vmem:[%s3 + $0x10] sm:$0xff]
    %v156 = vld [vmem:[%s3 + $0x18] sm:$0xff]
    %vm157 = vcmask 523264
    %v159 = vsel %vm157, %v151, 0
    %v162 = vsel %vm157, %v152, 0
    %v165 = vsel %vm157, %v153, 0
    %v168 = vsel %vm157, %v154, 0
    %v171 = vsel %vm157, %v155, 0
    %v174 = vsel %vm157, %v156, 0
    %176 = vmatprep.subr.mxu0 0.0
    %177 = vmatpush1.xpose.msra.mxu0 %v165
    %178 = vmatprep.subr.mxu0 0.0
    %179 = vmatpush1.xpose.msra.mxu0 %v168
    %180 = vmatprep.subr.mxu0 0.0
    %181 = vmatpush1.xpose.msra.mxu0 %v171
    %182 = vmatprep.subr.mxu0 0.0
    %183 = vmatpush1.xpose.msra.mxu0 %v174
    %184 = vmatprep.subr.mxu0 0.0
    %185 = vmatpush1.xpose.msra.mxu0 0.0
    %186 = vmatprep.subr.mxu0 0.0
    %187 = vmatpush1.xpose.msra.mxu0 0.0
    %188 = vmatprep.subr.mxu0 0.0
    %189 = vmatpush1.xpose.msra.mxu0 0.0
    %190 = vmatprep.subr.mxu0 0.0
    %191 = vmatpush1.xpose.msra.mxu0 0.0
    %192 = vmatprep.subr.mxu0 0.0
    %193 = vmatpush1.xpose.msra.mxu0 0.0
    %194 = vmatprep.subr.mxu0 0.0
    %195 = vmatpush1.xpose.msra.mxu0 0.0
    %196 = vmatprep.subr.mxu0 0.0
    %197 = vmatpush1.xpose.msra.mxu0 0.0
    %198 = vmatprep.subr.mxu0 0.0
    %199 = vmatpush1.xpose.msra.mxu0 0.0
    %200 = vmatprep.subr.mxu0 0.0
    %201 = vmatpush1.xpose.msra.mxu0 0.0
    %202 = vmatprep.subr.mxu0 0.0
    %203 = vmatpush1.xpose.msra.mxu0 0.0
    %204 = vmatprep.subr.mxu0 0.0
    %205 = vmatpush1.xpose.msra.mxu0 0.0
    %206 = vmatprep.subr.mxu0 0.0
    %207 = vmatpush1.xpose.msra.mxu0 0.0
    %208 = vmatprep.subr.mxu0 0.0
    %209 = vmatpush1.xpose.msra.mxu0 0.0
    %210 = vmatprep.subr.mxu0 0.0
    %211 = vmatpush1.xpose.msra.mxu0 0.0
    %212 = vmatprep.subr.mxu0 0.0
    %213 = vmatpush1.xpose.msra.mxu0 0.0
    %214 = vmatprep.subr.mxu0 0.0
    %215 = vmatpush1.xpose.msra.mxu0 0.0
    %216 = vmatprep.subr.mxu0 0.0
    %217 = vmatpush1.xpose.msra.mxu0 0.0
    %218 = vmatprep.subr.mxu0 0.0
    %219 = vmatpush1.xpose.msra.mxu0 0.0
    %220 = vmatprep.subr.mxu0 0.0
    %221 = vmatpush1.xpose.msra.mxu0 0.0
    %222 = vmatprep.subr.mxu0 0.0
    %223 = vmatpush1.xpose.msra.mxu0 0.0
    %224 = vmatprep.subr.mxu0 0.0
    %225 = vmatpush1.xpose.msra.mxu0 0.0
    %226 = vmatprep.subr.mxu0 0.0
    %227 = vmatpush1.xpose.msra.mxu0 0.0
    %228 = vmatprep.subr.mxu0 0.0
    %229 = vmatpush1.xpose.msra.mxu0 0.0
    %230 = vmatprep.subr.mxu0 0.0
    %231 = vmatpush1.xpose.msra.mxu0 0.0
    %232 = vmatprep.subr.mxu0 0.0
    %233 = vmatpush1.xpose.msra.mxu0 0.0
    %234 = vmatprep.subr.mxu0 0.0
    %235 = vmatpush1.xpose.msra.mxu0 0.0
    %236 = vmatprep.subr.mxu0 0.0
    %237 = vmatpush1.xpose.msra.mxu0 0.0
    %238 = vmatprep.subr.mxu0 0.0
    %239 = vmatpush1.xpose.msra.mxu0 0.0
    %240 = vmatprep.mubr.f32.mxu0 0.0
    %241 = vmatmul.mubr.f32.gmra.mrb[0].mxu0 %v159
    %v242 = vpop.f32.mrb[0].mxu0
    %v243 = vadd.f32 0.0, %v242
    %v244 = vpop.f32.mrb[0].mxu0
    %245 = vmatprep.mubr.f32.mxu0 0.0
    %246 = vmatmul.mubr.f32.gmra.mrb[0].mxu0 %v162
    %v247 = vpop.f32.mrb[0].mxu0
    %v248 = vadd.f32 0.0, %v247
    %v249 = vpop.f32.mrb[0].mxu0
    %250 = vdwg.mxu0
    %p251 = scmp.ne.s32.totalorder 0, 0
    // Predicated region
    $region26: #{tpu_custom_call.1} parent=1 // pred_check
      %p252 = pneg %p251
    $region27: #{tpu_custom_call.1} parent=1 // pred_check_branch
      %254 = sbr.rel (%p252) target = $region29
    $region28: #{tpu_custom_call.1} parent=1 // pred_region
      %v255 = vld [vmem:[#allocation2] sm:$0xff]
      %v256 = vld [vmem:[#allocation2 + $0x8] sm:$0xff]
      %v257 = vadd.f32 %v255, %v243
      %v258 = vadd.f32 %v256, %v248
      %259 = vst.msk [vmem:[#allocation2] sm:$0xff] %vm45, %v257
      %260 = vst.msk [vmem:[#allocation2 + $0x8] sm:$0xff] %vm45, %v258
    $region29: #{tpu_custom_call.1} parent=1 // pred_fallthru
      _
    // Predicated region
    $region30: #{tpu_custom_call.1} parent=1 // pred_check
      %p261 = pneg %p21
    $region31: #{tpu_custom_call.1} parent=1 // pred_check_branch
      %263 = sbr.rel (%p261) target = $region33
    $region32: #{tpu_custom_call.1} parent=1 // pred_region
      %v264 = vld [vmem:[#allocation2] sm:$0xff]
      %v265 = vld [vmem:[#allocation2 + $0x8] sm:$0xff]
      %v266 = vadd.f32 %v264, %v243
      %v267 = vadd.f32 %v265, %v248
      %v268 = vld [vmem:[%s4] sm:$0x1]
      %v270 = vlaneseq
      %v271 = vshrl.u32 %v270, 7
      %v272 = vsub.s32 0, %v271
      %v273 = vrot.slane %v268, %v272
      %v275 = vadd.f32 %v266, %v273
      %v276 = vadd.f32 %v267, %v273
      %277 = vst.msk [vmem:[#allocation3] sm:$0xff] %vm45, %v275
      %278 = vst.msk [vmem:[#allocation3 + $0x8] sm:$0xff] %vm45, %v276
    $region33: #{tpu_custom_call.1} parent=1 // pred_fallthru
      _
    // Predicated region
    $region34: #{tpu_custom_call.1} parent=1 // pred_check
      _
    $region35: #{tpu_custom_call.1} parent=1 // pred_check_branch
      %280 = sbr.rel (0) target = $region37
    $region36: #{tpu_custom_call.1} parent=1 // pred_region
      %s282 = ssub.s32 256, 256
      %283 = vsyncadd [#allocation4], %s282
      %s284 = sshll.u32 [#allocation3], 4
      %s285 = int_to_ptr.vmem [resolvable:$true] %s284
      %290 = dma.vmem_to_hbm [thread:$0]  %s285, 256, %s5, [#allocation4], 128, 128, 8
    $region37: #{tpu_custom_call.1} parent=1 // pred_fallthru
      _
    // Predicated region
    $region38: #{tpu_custom_call.1} parent=1 // pred_check
      _
    $region39: #{tpu_custom_call.1} parent=1 // pred_check_branch
      %292 = sbr.rel (0) target = $region41
    $region40: #{tpu_custom_call.1} parent=1 // pred_region
      %293 = dma.done [#allocation4], 256
    $region41: #{tpu_custom_call.1} parent=1 // pred_fallthru
      _
    %294 = vsyncpa [#allocation4], 1

</llo_original>
